<compile_context>
chip_gen: v5e
topology: v5e:2x2
jax: 0.10.0
libtpu: 0.0.40
codegen_flags: <defaults>
</compile_context>

<pallas_src>
import functools

import jax
import jax.numpy as jnp
from jax.experimental import pallas as pl
from jax.experimental.pallas import tpu as pltpu

HIDDEN = 64        # hidden width of the dueling MLP head
OUT_PAD = 128      # lane-dense fused-head width (Q in cols 0..action-1, rest 0)
BIAS_LANES = 3 * OUT_PAD   # b1 @ [0,64), bh @ [128,256), b2 @ [256,384)


# ----------------------------- Pallas kernel --------------------------------
def _dueling_q_kernel(x_ref, w1_ref, wh_ref, w2_ref, bias_ref, q_ref):
    # bf16 MXU inputs, f32 accumulation; elementwise math stays f32.
    x = x_ref[...]
    if x.dtype != jnp.bfloat16:
        x = x.astype(jnp.bfloat16)

    hidden = w1_ref.shape[1]
    wh_n = wh_ref.shape[1]

    # static, lane-aligned bias views out of the single concatenated bias row
    b1 = bias_ref[:, 0:hidden]                       # (1, hidden)
    bh = bias_ref[:, OUT_PAD:OUT_PAD + wh_n]         # (1, 2*hidden)
    b2 = bias_ref[:, 2 * OUT_PAD:3 * OUT_PAD]        # (1, OUT_PAD)

    # shared feature layer: [TB, state] @ [state, hidden]
    feat = jnp.dot(x, w1_ref[...], preferred_element_type=jnp.float32) + b1
    feat = jnp.maximum(feat, 0.0)

    # fused value||advantage hidden layer: one [hidden, 2*hidden] matmul
    h = jnp.dot(feat.astype(jnp.bfloat16), wh_ref[...],
                preferred_element_type=jnp.float32) + bh
    h = jnp.maximum(h, 0.0)

    # fused output head; dueling combine (V add + mean-subtract) is pre-folded
    # into w2/b2, so this directly yields Q in lanes 0..action-1.
    q = jnp.dot(h.astype(jnp.bfloat16), w2_ref[...],
                preferred_element_type=jnp.float32) + b2

    # full-width lane-dense (unmasked) store; wrapper slices to [B, action]
    q_ref[...] = q.astype(q_ref.dtype)


# ----------------------------- wrapper ---------------------------------------
def _round_up(n, m):
    return ((n + m - 1) // m) * m


def _pick_tile(b):
    """Batch tile: big tiles for HBM-roofline efficiency, >=2 grid steps when the
    batch allows it (so v7x's 2nd TensorCore participates), multiples of 256 to
    fill the v6e/v7x 2x256 MXU."""
    bp8 = _round_up(b, 8)
    if bp8 >= 1024:
        return 512
    if bp8 >= 512:
        return 256
    if bp8 >= 256:
        return 128
    return bp8        # small batch: single 8-aligned tile


@functools.partial(jax.jit, static_argnames=("action_size", "out_dtype"))
def dueling_q_forward(x, params, action_size, out_dtype=jnp.float32):
    """x: [B, state_size] f32/bf16  ->  Q: [B, action_size]."""
    b, state = x.shape
    tb = _pick_tile(b)
    bp = _round_up(b, tb)
    if bp != b:
        x = jnp.pad(x, ((0, bp - b), (0, 0)))
    grid = (bp // tb,)

    def const2d(arr):   # whole-array block, DMA'd once across the batch grid
        return pl.BlockSpec(arr.shape, lambda i: (0, 0))

    w1, wh, w2, bias = params["w1"], params["wh"], params["w2"], params["bias"]

    q_pad = pl.pallas_call(
        _dueling_q_kernel,
        out_shape=jax.ShapeDtypeStruct((bp, OUT_PAD), out_dtype),
        grid=grid,
        in_specs=[
            pl.BlockSpec((tb, state), lambda i: (i, 0)),   # x streamed by batch tile
            const2d(w1), const2d(wh), const2d(w2), const2d(bias),
        ],
        out_specs=pl.BlockSpec((tb, OUT_PAD), lambda i: (i, 0)),  # lane-dense out
        compiler_params=pltpu.CompilerParams(
            dimension_semantics=("parallel",)),
    )(x, w1, wh, w2, bias)
    return q_pad[:b, :action_size]


@functools.partial(jax.jit, static_argnames=("action_size", "out_dtype"))
def dueling_q_forward_both(x, stacked, action_size, out_dtype=jnp.float32):
    """Evaluate online AND target in ONE pallas_call.

    stacked: pytree of weights with a leading dim of 2 (0 = online, 1 = target).
    Returns Q of shape [2, B, action_size]."""
    b, state = x.shape
    tb = _pick_tile(b)
    bp = _round_up(b, tb)
    if bp != b:
        x = jnp.pad(x, ((0, bp - b), (0, 0)))
    # network axis is the slow (outer) grid axis -> weights DMA'd once per net
    grid = (2, bp // tb)

    def stacked_spec(arr):  # (2, r, c): kernel sees (r, c); grid axis 0 picks net
        return pl.BlockSpec((pl.Squeezed(),) + arr.shape[1:],
                            lambda n, i: (n, 0, 0))

    w1, wh, w2, bias = (stacked[k] for k in ("w1", "wh", "w2", "bias"))

    q_pad = pl.pallas_call(
        _dueling_q_kernel,
        out_shape=jax.ShapeDtypeStruct((2, bp, OUT_PAD), out_dtype),
        grid=grid,
        in_specs=[
            pl.BlockSpec((tb, state), lambda n, i: (i, 0)),
            stacked_spec(w1), stacked_spec(wh), stacked_spec(w2),
            stacked_spec(bias),
        ],
        out_specs=pl.BlockSpec((pl.Squeezed(), tb, OUT_PAD),
                               lambda n, i: (n, i, 0)),
        compiler_params=pltpu.CompilerParams(
            dimension_semantics=("parallel", "parallel")),
    )(x, w1, wh, w2, bias)
    return q_pad[:, :b, :action_size]


# ----------------------------- parameter init -------------------------------
def _linear_init(key, fan_in, fan_out):
    # Matches PyTorch nn.Linear default: U(-1/sqrt(fan_in), 1/sqrt(fan_in))
    kw, kb = jax.random.split(key)
    bound = 1.0 / jnp.sqrt(float(fan_in))
    w = jax.random.uniform(kw, (fan_in, fan_out), jnp.float32, -bound, bound)
    b = jax.random.uniform(kb, (1, fan_out), jnp.float32, -bound, bound)
    return w, b


def init_dueling_params(key, state_size, hidden, action_size):
    keys = jax.random.split(key, 5)
    w1, b1 = _linear_init(keys[0], state_size, hidden)
    wv1, bv1 = _linear_init(keys[1], hidden, hidden)
    wv2, bv2 = _linear_init(keys[2], hidden, 1)
    wa1, ba1 = _linear_init(keys[3], hidden, hidden)
    wa2, ba2 = _linear_init(keys[4], hidden, action_size)
    return dict(w1=w1, b1=b1, wv1=wv1, bv1=bv1, wv2=wv2, bv2=bv2,
                wa1=wa1, ba1=ba1, wa2=wa2, ba2=ba2)


def fuse_params(raw, action_size):
    """Build the fused/padded bf16 weights consumed by the kernel.

    Folds the dueling combine (V add + mean-subtract) into the output-head
    weights, in f32, before the bf16 cast."""
    hidden = raw["w1"].shape[1]
    assert hidden == HIDDEN, "bias layout assumes hidden == 64"
    assert 0 < action_size <= OUT_PAD, "action_size must fit in 128 lanes"
    n = action_size

    # stage 1: shared layer (weights bf16 for the MXU, biases stay f32)
    w1 = raw["w1"].astype(jnp.bfloat16)

    # stage 2: value || advantage hidden layers -> one [hidden, 2*hidden] matmul
    wh = jnp.concatenate([raw["wv1"], raw["wa1"]], axis=1).astype(jnp.bfloat16)

    # stage 3: output head with the dueling combine folded in (f32 math):
    #   Q_j = sum_i ha[i]*(Wa2 @ T)[i,j] + sum_i hv[i]*Wv2[i,0]
    #         + (ba2 @ T)[j] + bv2,   T = I - (1/n) 11^T
    T = jnp.eye(n, dtype=jnp.float32) - (1.0 / n)
    wa2_q = raw["wa2"] @ T                 # (hidden, n) mean-centered adv weights
    ba2_q = raw["ba2"] @ T                 # (1, n)

    w2 = jnp.zeros((2 * hidden, OUT_PAD), jnp.float32)
    w2 = w2.at[:hidden, :n].set(jnp.broadcast_to(raw["wv2"], (hidden, n)))  # V
    w2 = w2.at[hidden:, :n].set(wa2_q)                                      # A
    w2 = w2.astype(jnp.bfloat16)

    b2 = jnp.zeros((1, OUT_PAD), jnp.float32)
    b2 = b2.at[:, :n].set(ba2_q + raw["bv2"][0, 0])

    # single concatenated bias row (lane-aligned segments -> one DMA stream)
    bias = jnp.zeros((1, BIAS_LANES), jnp.float32)
    bias = bias.at[:, 0:hidden].set(raw["b1"])
    bias = bias.at[:, OUT_PAD:OUT_PAD + 2 * hidden].set(
        jnp.concatenate([raw["bv1"], raw["ba1"]], axis=1))
    bias = bias.at[:, 2 * OUT_PAD:3 * OUT_PAD].set(b2)

    return dict(w1=w1, wh=wh, w2=w2, bias=bias)


# ----------------------------- module wrapper --------------------------------
class DuelingQNet:
    """JAX/Pallas equivalent of the PyTorch DuelingQNet module."""

    def __init__(self, input_dim, output_dim, hidden=HIDDEN, key=None):
        c, h = input_dim  # c = state_size; h unused by the MLP head (as in reference)
        self.block_num = 3
        self.action_size = output_dim
        if key is None:
            key = jax.random.PRNGKey(0)
        self.online_raw = init_dueling_params(key, c, hidden, output_dim)
        self.online = fuse_params(self.online_raw, output_dim)
        # target.load_state_dict(online.state_dict()) -> exact copy
        self.target_raw = jax.tree_util.tree_map(lambda p: p, self.online_raw)
        self.target = jax.tree_util.tree_map(lambda p: p, self.online)
        # stacked weights: one pallas_call serves both networks
        self.both = jax.tree_util.tree_map(lambda o, t: jnp.stack([o, t]),
                                           self.online, self.target)
        # TODO(synk): requires_grad=False on target has no forward-pass analog.

    def forward(self, x, model):
        if model == "online":
            return dueling_q_forward(x, self.online, self.action_size)
        elif model == "target":
            return dueling_q_forward(x, self.target, self.action_size)
        raise ValueError(model)

    def forward_both(self, x):
        """[2, B, action] = (online, target) Q-values from one kernel dispatch."""
        return dueling_q_forward_both(x, self.both, self.action_size)

    __call__ = forward


# ----------------------------- references (pure JAX) --------------------------
def _reference_forward_f32(x, p):
    """Original f32 module math (unfused weights)."""
    feat = jnp.maximum(x @ p["w1"] + p["b1"], 0.0)
    v = jnp.maximum(feat @ p["wv1"] + p["bv1"], 0.0) @ p["wv2"] + p["bv2"]
    a = jnp.maximum(feat @ p["wa1"] + p["ba1"], 0.0) @ p["wa2"] + p["ba2"]
    return v + a - jnp.mean(a, axis=-1, keepdims=True)


def _reference_forward_bf16(x, fused, action_size):
    """Exact emulation of the kernel math (bf16 matmul inputs, f32 accumulation,
    dueling combine folded into the fused output weights)."""
    def mm(a, w):
        return jnp.dot(a.astype(jnp.bfloat16), w, preferred_element_type=jnp.float32)
    b1 = fused["bias"][:, :HIDDEN]
    bh = fused["bias"][:, OUT_PAD:OUT_PAD + 2 * HIDDEN]
    b2 = fused["bias"][:, 2 * OUT_PAD:3 * OUT_PAD]
    feat = jnp.maximum(mm(x, fused["w1"]) + b1, 0.0)
    h = jnp.maximum(mm(feat, fused["wh"]) + bh, 0.0)
    q = mm(h, fused["w2"]) + b2
    return q[:, :action_size]


# ----------------------------------- main ------------------------------------
if __name__ == "__main__":
    key = jax.random.PRNGKey(0)
    k_param, k_x = jax.random.split(key)

    state_size = 32   # c
    h_dim = 8         # second entry of input_dim (unused by the MLP head)
    action_size = 4
    batch = 64

    net = DuelingQNet(input_dim=(state_size, h_dim), output_dim=action_size,
                      hidden=HIDDEN, key=k_param)

    x = jax.random.normal(k_x, (batch, state_size), dtype=jnp.float32)

    q_online = net(x, "online")
    q_target = net(x, "target")
    q_both = net.forward_both(x)
    jax.block_until_ready((q_online, q_target, q_both))

    assert q_online.shape == (batch, action_size)
    assert q_both.shape == (2, batch, action_size)

    # Tight check vs. a bf16-faithful emulation of the kernel math.
    ref_bf16 = _reference_forward_bf16(x, net.online, action_size)
    assert jnp.allclose(q_online, ref_bf16, atol=2e-3, rtol=2e-3), \
        float(jnp.max(jnp.abs(q_online - ref_bf16)))

    # Loose check vs. the original f32 module semantics (bf16 weight quantization).
    ref_f32 = _reference_forward_f32(x, net.online_raw)
    assert jnp.allclose(q_online, ref_f32, atol=1e-1, rtol=1e-1), \
        float(jnp.max(jnp.abs(q_online - ref_f32)))

    # target is an exact copy; the fused both-network dispatch must agree too.
    assert jnp.allclose(q_online, q_target)
    assert jnp.allclose(q_both[0], q_online, atol=1e-5, rtol=1e-5)
    assert jnp.allclose(q_both[1], q_target, atol=1e-5, rtol=1e-5)

    print("KERNEL_OK")
</pallas_src>

<mosaic_0001>
module attributes {stable_mosaic.version = 11 : i64} {
  func.func @_dueling_q_kernel(%arg0: i32, %arg1: memref<64x32xf32, #tpu.memory_space<vmem>>, %arg2: memref<32x64xbf16, #tpu.memory_space<vmem>>, %arg3: memref<64x128xbf16, #tpu.memory_space<vmem>>, %arg4: memref<128x128xbf16, #tpu.memory_space<vmem>>, %arg5: memref<1x384xf32, #tpu.memory_space<vmem>>, %arg6: memref<64x128xf32, #tpu.memory_space<vmem>>) attributes {dimension_semantics = [#tpu.dimension_semantics<parallel>], iteration_bounds = array<i64: 1>, scalar_prefetch = 0 : i64, scratch_operands = 0 : i64, tpu.core_type = #tpu.core_type<tc>, window_params = [{transform_indices = @transform_0, window_bounds = array<i64: 64, 32>}, {pipeline_mode = #tpu.pipeline_mode<synchronous>, transform_indices = @transform_1, window_bounds = array<i64: 32, 64>}, {pipeline_mode = #tpu.pipeline_mode<synchronous>, transform_indices = @transform_2, window_bounds = array<i64: 64, 128>}, {pipeline_mode = #tpu.pipeline_mode<synchronous>, transform_indices = @transform_3, window_bounds = array<i64: 128, 128>}, {pipeline_mode = #tpu.pipeline_mode<synchronous>, transform_indices = @transform_4, window_bounds = array<i64: 1, 384>}, {transform_indices = @transform_5, window_bounds = array<i64: 64, 128>}]} {
    %c0 = arith.constant 0 : index
    %c0_0 = arith.constant 0 : index
    %0 = vector.load %arg1[%c0, %c0_0] : memref<64x32xf32, #tpu.memory_space<vmem>>, vector<64x32xf32>
    %1 = arith.truncf %0 : vector<64x32xf32> to vector<64x32xbf16>
    %c0_1 = arith.constant 0 : index
    %c0_2 = arith.constant 0 : index
    %2 = vector.load %arg5[%c0_1, %c0_2] : memref<1x384xf32, #tpu.memory_space<vmem>>, vector<1x64xf32>
    %c0_3 = arith.constant 0 : index
    %c128 = arith.constant 128 : index
    %3 = vector.load %arg5[%c0_3, %c128] : memref<1x384xf32, #tpu.memory_space<vmem>>, vector<1x128xf32>
    %c0_4 = arith.constant 0 : index
    %c256 = arith.constant 256 : index
    %4 = vector.load %arg5[%c0_4, %c256] : memref<1x384xf32, #tpu.memory_space<vmem>>, vector<1x128xf32>
    %c0_5 = arith.constant 0 : index
    %c0_6 = arith.constant 0 : index
    %5 = vector.load %arg2[%c0_5, %c0_6] : memref<32x64xbf16, #tpu.memory_space<vmem>>, vector<32x64xbf16>
    %cst = arith.constant dense<0.000000e+00> : vector<64x64xf32>
    %6 = tpu.matmul %1, %5, %cst {dimension_numbers = #tpu.dot_dimension_numbers<[1], [0], [0], [1], [0, 0, 1, 1], [], []>} : vector<64x32xbf16>, vector<32x64xbf16>, vector<64x64xf32> -> vector<64x64xf32>
    %7 = vector.broadcast %2 : vector<1x64xf32> to vector<64x64xf32>
    %8 = arith.addf %6, %7 : vector<64x64xf32>
    %cst_7 = arith.constant 0.000000e+00 : f32
    %9 = vector.broadcast %cst_7 : f32 to vector<64x64xf32>
    %10 = arith.maximumf %8, %9 : vector<64x64xf32>
    %11 = arith.truncf %10 : vector<64x64xf32> to vector<64x64xbf16>
    %c0_8 = arith.constant 0 : index
    %c0_9 = arith.constant 0 : index
    %12 = vector.load %arg3[%c0_8, %c0_9] : memref<64x128xbf16, #tpu.memory_space<vmem>>, vector<64x128xbf16>
    %cst_10 = arith.constant dense<0.000000e+00> : vector<64x128xf32>
    %13 = tpu.matmul %11, %12, %cst_10 {dimension_numbers = #tpu.dot_dimension_numbers<[1], [0], [0], [1], [0, 0, 1, 1], [], []>} : vector<64x64xbf16>, vector<64x128xbf16>, vector<64x128xf32> -> vector<64x128xf32>
    %14 = vector.broadcast %3 : vector<1x128xf32> to vector<64x128xf32>
    %15 = arith.addf %13, %14 : vector<64x128xf32>
    %cst_11 = arith.constant 0.000000e+00 : f32
    %16 = vector.broadcast %cst_11 : f32 to vector<64x128xf32>
    %17 = arith.maximumf %15, %16 : vector<64x128xf32>
    %18 = arith.truncf %17 : vector<64x128xf32> to vector<64x128xbf16>
    %c0_12 = arith.constant 0 : index
    %c0_13 = arith.constant 0 : index
    %19 = vector.load %arg4[%c0_12, %c0_13] : memref<128x128xbf16, #tpu.memory_space<vmem>>, vector<128x128xbf16>
    %cst_14 = arith.constant dense<0.000000e+00> : vector<64x128xf32>
    %20 = tpu.matmul %18, %19, %cst_14 {dimension_numbers = #tpu.dot_dimension_numbers<[1], [0], [0], [1], [0, 0, 1, 1], [], []>} : vector<64x128xbf16>, vector<128x128xbf16>, vector<64x128xf32> -> vector<64x128xf32>
    %21 = vector.broadcast %4 : vector<1x128xf32> to vector<64x128xf32>
    %22 = arith.addf %20, %21 : vector<64x128xf32>
    %c0_15 = arith.constant 0 : index
    %c0_16 = arith.constant 0 : index
    %23 = vector.load %arg6[%c0_15, %c0_16] : memref<64x128xf32, #tpu.memory_space<vmem>>, vector<64x128xf32>
    tpu.vector_store %arg6[%c0_15, %c0_16], %22 {strides = array<i32>} : memref<64x128xf32, #tpu.memory_space<vmem>>, vector<64x128xf32>,
    return
  }
  func.func @transform_0(%arg0: i32) -> (i32, i32) {
    %c0_i32 = arith.constant 0 : i32
    %c0_i32_0 = arith.constant 0 : i32
    return %arg0, %c0_i32 : i32, i32
  }
  func.func @transform_1(%arg0: i32) -> (i32, i32) {
    %c0_i32 = arith.constant 0 : i32
    %c0_i32_0 = arith.constant 0 : i32
    %c0_i32_1 = arith.constant 0 : i32
    return %c0_i32, %c0_i32_0 : i32, i32
  }
  func.func @transform_2(%arg0: i32) -> (i32, i32) {
    %c0_i32 = arith.constant 0 : i32
    %c0_i32_0 = arith.constant 0 : i32
    %c0_i32_1 = arith.constant 0 : i32
    return %c0_i32, %c0_i32_0 : i32, i32
  }
  func.func @transform_3(%arg0: i32) -> (i32, i32) {
    %c0_i32 = arith.constant 0 : i32
    %c0_i32_0 = arith.constant 0 : i32
    %c0_i32_1 = arith.constant 0 : i32
    return %c0_i32, %c0_i32_0 : i32, i32
  }
  func.func @transform_4(%arg0: i32) -> (i32, i32) {
    %c0_i32 = arith.constant 0 : i32
    %c0_i32_0 = arith.constant 0 : i32
    %c0_i32_1 = arith.constant 0 : i32
    return %c0_i32, %c0_i32_0 : i32, i32
  }
  func.func @transform_5(%arg0: i32) -> (i32, i32) {
    %c0_i32 = arith.constant 0 : i32
    %c0_i32_0 = arith.constant 0 : i32
    return %arg0, %c0_i32 : i32, i32
  }
}

</mosaic_0001>

<llo_original>
// kernel: dueling_q_forward.1
$region0: #{dueling_q_forward.1}
  #allocation0 [shape = 'u32[]', space=smem, size = 0x4, offset = 0x4, fixed_abs, tag = 'smem constant byte address 0x4 - core index']
  #allocation1 [shape = 'u32[72,128]{1,0:T(1,128)}', space=vmem, size = 0x9000, scoped, tag = 'internal scratch']
  %s0 = inlined_call_operand.vmem [shape: f32[64,32], index: 0, kind: input, shape index: {}]
  %s1 = inlined_call_operand.hbm [shape: bf16[32,64], index: 1, kind: input, shape index: {}]
  %s2 = inlined_call_operand.vmem [shape: bf16[64,128], index: 2, kind: input, shape index: {}]
  %s3 = inlined_call_operand.vmem [shape: bf16[128,128], index: 3, kind: input, shape index: {}]
  %s4 = inlined_call_operand.hbm [shape: f32[1,384], index: 4, kind: input, shape index: {}]
  %s5 = inlined_call_operand.vmem [shape: f32[64,128], index: 5, kind: output, shape index: {}]
  %s6 = sld [smem:[#allocation0]]
  $region38: #{dueling_q_forward.1} parent=0
    _
  %s8 = ssub.s32 1, %s6
  %s9 = scalar_select 0, %s8, %s6
  $region1: #{dueling_q_forward.1} parent=0
    #allocation2 [shape = 'u8[8192]{0}', space=vmem, size = 0x2000, scoped, tag = 'input window, operand 1, single buffered']
    #allocation3 [shape = 's32[1]{0}', space=sflag, size = 0x4, scoped, tag = 'scoped memory for dueling_q_forward.1']
    #allocation4 [shape = 'u8[1536]{0}', space=vmem, size = 0x800, scoped, tag = 'input window, operand 4, single buffered']
    #allocation5 [shape = 's32[1]{0}', space=sflag, size = 0x4, scoped, tag = 'scoped memory for dueling_q_forward.1']
    %10 = vsyncpa [#allocation3], 0
    %11 = vsyncpa [#allocation5], 0
    // Predicated region
    $region2: #{dueling_q_forward.1} parent=1 // pred_check
      _
    $region3: #{dueling_q_forward.1} parent=1 // pred_check_branch
      %13 = sbr.rel (0) target = $region5
    $region4: #{dueling_q_forward.1} parent=1 // pred_region
      _
    $region5: #{dueling_q_forward.1} parent=1 // pred_fallthru
      _
    // Predicated region
    $region6: #{dueling_q_forward.1} parent=1 // pred_check
      _
    $region7: #{dueling_q_forward.1} parent=1 // pred_check_branch
      %15 = sbr.rel (0) target = $region9
    $region8: #{dueling_q_forward.1} parent=1 // pred_region
      %17 = vsyncadd [#allocation3], 0
      %s18 = sshll.u32 %s1, 4
      %s19 = int_to_ptr.hbm [resolvable:$true] %s18
      %s20 = sshll.u32 [#allocation2], 4
      %s21 = int_to_ptr.vmem [resolvable:$true] %s20
      %26 = dma.hbm_to_vmem [thread:$0]  %s19, 256, %s21, [#allocation3], 64, 64, 4
    $region9: #{dueling_q_forward.1} parent=1 // pred_fallthru
      _
    // Predicated region
    $region10: #{dueling_q_forward.1} parent=1 // pred_check
      _
    $region11: #{dueling_q_forward.1} parent=1 // pred_check_branch
      %28 = sbr.rel (0) target = $region13
    $region12: #{dueling_q_forward.1} parent=1 // pred_region
      _
    $region13: #{dueling_q_forward.1} parent=1 // pred_fallthru
      _
    // Predicated region
    $region14: #{dueling_q_forward.1} parent=1 // pred_check
      _
    $region15: #{dueling_q_forward.1} parent=1 // pred_check_branch
      %30 = sbr.rel (0) target = $region17
    $region16: #{dueling_q_forward.1} parent=1 // pred_region
      _
    $region17: #{dueling_q_forward.1} parent=1 // pred_fallthru
      _
    // Predicated region
    $region18: #{dueling_q_forward.1} parent=1 // pred_check
      _
    $region19: #{dueling_q_forward.1} parent=1 // pred_check_branch
      %32 = sbr.rel (0) target = $region21
    $region20: #{dueling_q_forward.1} parent=1 // pred_region
      %34 = vsyncadd [#allocation5], 0
      %s36 = sshll.u32 %s4, 4
      %s37 = int_to_ptr.hbm [resolvable:$true] %s36
      %s38 = sshll.u32 [#allocation4], 4
      %s39 = int_to_ptr.vmem [resolvable:$true] %s38
      %41 = dma.hbm_to_vmem [thread:$0]  %s37, 48, %s39, [#allocation5]
    $region21: #{dueling_q_forward.1} parent=1 // pred_fallthru
      _
    // Predicated region
    $region22: #{dueling_q_forward.1} parent=1 // pred_check
      _
    $region23: #{dueling_q_forward.1} parent=1 // pred_check_branch
      %43 = sbr.rel (0) target = $region25
    $region24: #{dueling_q_forward.1} parent=1 // pred_region
      %45 = dma.done [#allocation3], 256
    $region25: #{dueling_q_forward.1} parent=1 // pred_fallthru
      _
    // Predicated region
    $region26: #{dueling_q_forward.1} parent=1 // pred_check
      _
    $region27: #{dueling_q_forward.1} parent=1 // pred_check_branch
      %47 = sbr.rel (0) target = $region29
    $region28: #{dueling_q_forward.1} parent=1 // pred_region
      %49 = dma.done [#allocation5], 48
    $region29: #{dueling_q_forward.1} parent=1 // pred_fallthru
      _
    %v51 = vld [vmem:[%s0] sm:$0xff]
    %v52 = vld [vmem:[%s0 + $0x8] sm:$0xff]
    %v53 = vld [vmem:[%s0 + $0x10] sm:$0xff]
    %v54 = vld [vmem:[%s0 + $0x18] sm:$0xff]
    %v55 = vld [vmem:[%s0 + $0x20] sm:$0xff]
    %v56 = vld [vmem:[%s0 + $0x28] sm:$0xff]
    %v57 = vld [vmem:[%s0 + $0x30] sm:$0xff]
    %v58 = vld [vmem:[%s0 + $0x38] sm:$0xff]
    %v59 = vpack.c.bf16 %v52, %v51
    %v60 = vpack.c.bf16 %v54, %v53
    %v61 = vpack.c.bf16 %v56, %v55
    %v62 = vpack.c.bf16 %v58, %v57
    %v63 = vld [vmem:[#allocation4] sm:$0x1]
    %v64 = vld [vmem:[#allocation4 + $0x1] sm:$0x1]
    %v65 = vld [vmem:[#allocation4 + $0x2] sm:$0x1]
    %v66 = vld [vmem:[#allocation2] sm:$0xf]
    %v67 = vld [vmem:[#allocation2 + $0x4] sm:$0xf]
    %v68 = vld [vmem:[#allocation2 + $0x8] sm:$0xf]
    %v69 = vld [vmem:[#allocation2 + $0xc] sm:$0xf]
    %v71 = vperm.slane %v63, 0
    %v77 = vunpack.c.l.b16 %v66
    %v78 = vunpack.c.l.b16 %v67
    %v79 = vunpack.c.l.b16 %v68
    %v80 = vunpack.c.l.b16 %v69
    %v81 = vpack.c.b16 %v78, %v77
    %v82 = vpack.c.b16 %v80, %v79
    %vm85 = vcmask 261120
    %v87 = vsel %vm85, %v59, 0
    %v90 = vsel %vm85, %v60, 0
    %v93 = vsel %vm85, %v61, 0
    %v96 = vsel %vm85, %v62, 0
    %98 = vmatpush.bf16.msra.mxu0 0
    %99 = vmatpush.bf16.msra.mxu0 0
    %100 = vmatpush.bf16.msra.mxu0 0
    %101 = vmatpush.bf16.msra.mxu0 0
    %102 = vmatpush.bf16.msra.mxu0 0
    %103 = vmatpush.bf16.msra.mxu0 0
    %104 = vmatpush.bf16.msra.mxu0 %v82
    %105 = vmatpush.bf16.msra.mxu0 %v81
    %106 = vmatmul.bf16.gmra.mxu0 %v87
    %v107 = vpop.f32.mrf.mxu0
    %v108 = vadd.f32 %v71, %v107
    %v109 = vpop.f32.mrf.mxu0
    %v110 = vadd.f32 %v71, %v109
    %111 = vmatmul.bf16.gmra.mxu0 %v90
    %v112 = vpop.f32.mrf.mxu0
    %v113 = vadd.f32 %v71, %v112
    %v114 = vpop.f32.mrf.mxu0
    %v115 = vadd.f32 %v71, %v114
    %116 = vmatmul.bf16.gmra.mxu0 %v93
    %v117 = vpop.f32.mrf.mxu0
    %v118 = vadd.f32 %v71, %v117
    %v119 = vpop.f32.mrf.mxu0
    %v120 = vadd.f32 %v71, %v119
    %121 = vmatmul.bf16.gmra.mxu0 %v96
    %v122 = vpop.f32.mrf.mxu0
    %v123 = vadd.f32 %v71, %v122
    %v124 = vpop.f32.mrf.mxu0
    %v125 = vadd.f32 %v71, %v124
    %126 = vdwg.mxu0
    %v127 = vmax.f32 %v108, 0.0
    %v128 = vmax.f32 %v110, 0.0
    %v129 = vmax.f32 %v113, 0.0
    %v130 = vmax.f32 %v115, 0.0
    %v131 = vmax.f32 %v118, 0.0
    %v132 = vmax.f32 %v120, 0.0
    %v133 = vmax.f32 %v123, 0.0
    %v134 = vmax.f32 %v125, 0.0
    %v135 = vpack.c.bf16 %v128, %v127
    %v136 = vpack.c.bf16 %v130, %v129
    %v137 = vpack.c.bf16 %v132, %v131
    %v138 = vpack.c.bf16 %v134, %v133
    %v139 = vld [vmem:[%s2] sm:$0xf]
    %v140 = vld [vmem:[%s2 + $0x4] sm:$0xf]
    %v141 = vld [vmem:[%s2 + $0x8] sm:$0xf]
    %v142 = vld [vmem:[%s2 + $0xc] sm:$0xf]
    %v143 = vld [vmem:[%s2 + $0x10] sm:$0xf]
    %v144 = vld [vmem:[%s2 + $0x14] sm:$0xf]
    %v145 = vld [vmem:[%s2 + $0x18] sm:$0xf]
    %v146 = vld [vmem:[%s2 + $0x1c] sm:$0xf]
    %v148 = vperm.slane %v64, 0
    %v158 = vunpack.c.l.b16 %v139
    %v159 = vunpack.c.l.b16 %v140
    %v160 = vunpack.c.l.b16 %v141
    %v161 = vunpack.c.l.b16 %v142
    %v162 = vunpack.c.l.b16 %v143
    %v163 = vunpack.c.l.b16 %v144
    %v164 = vunpack.c.l.b16 %v145
    %v165 = vunpack.c.l.b16 %v146
    %v166 = vpack.c.b16 %v159, %v158
    %v167 = vpack.c.b16 %v161, %v160
    %v168 = vpack.c.b16 %v163, %v162
    %v169 = vpack.c.b16 %v165, %v164
    %vm174 = vcmask 523264
    %v176 = vsel %vm174, %v135, 0
    %v179 = vsel %vm174, %v136, 0
    %v182 = vsel %vm174, %v137, 0
    %v185 = vsel %vm174, %v138, 0
    %187 = vmatpush.bf16.msra.mxu0 0
    %188 = vmatpush.bf16.msra.mxu0 0
    %189 = vmatpush.bf16.msra.mxu0 0
    %190 = vmatpush.bf16.msra.mxu0 0
    %191 = vmatpush.bf16.msra.mxu0 %v169
    %192 = vmatpush.bf16.msra.mxu0 %v168
    %193 = vmatpush.bf16.msra.mxu0 %v167
    %194 = vmatpush.bf16.msra.mxu0 %v166
    %195 = vmatmul.bf16.gmra.mxu0 %v176
    %v196 = vpop.f32.mrf.mxu0
    %v197 = vadd.f32 %v148, %v196
    %v198 = vpop.f32.mrf.mxu0
    %v199 = vadd.f32 %v148, %v198
    %200 = vmatmul.bf16.gmra.mxu0 %v179
    %v201 = vpop.f32.mrf.mxu0
    %v202 = vadd.f32 %v148, %v201
    %v203 = vpop.f32.mrf.mxu0
    %v204 = vadd.f32 %v148, %v203
    %205 = vmatmul.bf16.gmra.mxu0 %v182
    %v206 = vpop.f32.mrf.mxu0
    %v207 = vadd.f32 %v148, %v206
    %v208 = vpop.f32.mrf.mxu0
    %v209 = vadd.f32 %v148, %v208
    %210 = vmatmul.bf16.gmra.mxu0 %v185
    %v211 = vpop.f32.mrf.mxu0
    %v212 = vadd.f32 %v148, %v211
    %v213 = vpop.f32.mrf.mxu0
    %v214 = vadd.f32 %v148, %v213
    %215 = vdwg.mxu0
    %v216 = vmax.f32 %v197, 0.0
    %v217 = vmax.f32 %v199, 0.0
    %v218 = vmax.f32 %v202, 0.0
    %v219 = vmax.f32 %v204, 0.0
    %v220 = vmax.f32 %v207, 0.0
    %v221 = vmax.f32 %v209, 0.0
    %v222 = vmax.f32 %v212, 0.0
    %v223 = vmax.f32 %v214, 0.0
    %v224 = vpack.c.bf16 %v217, %v216
    %v225 = vpack.c.bf16 %v219, %v218
    %v226 = vpack.c.bf16 %v221, %v220
    %v227 = vpack.c.bf16 %v223, %v222
    %v228 = vld [vmem:[%s3] sm:$0xf]
    %v229 = vld [vmem:[%s3 + $0x4] sm:$0xf]
    %v230 = vld [vmem:[%s3 + $0x8] sm:$0xf]
    %v231 = vld [vmem:[%s3 + $0xc] sm:$0xf]
    %v232 = vld [vmem:[%s3 + $0x10] sm:$0xf]
    %v233 = vld [vmem:[%s3 + $0x14] sm:$0xf]
    %v234 = vld [vmem:[%s3 + $0x18] sm:$0xf]
    %v235 = vld [vmem:[%s3 + $0x1c] sm:$0xf]
    %v236 = vld [vmem:[%s3 + $0x20] sm:$0xf]
    %v237 = vld [vmem:[%s3 + $0x24] sm:$0xf]
    %v238 = vld [vmem:[%s3 + $0x28] sm:$0xf]
    %v239 = vld [vmem:[%s3 + $0x2c] sm:$0xf]
    %v240 = vld [vmem:[%s3 + $0x30] sm:$0xf]
    %v241 = vld [vmem:[%s3 + $0x34] sm:$0xf]
    %v242 = vld [vmem:[%s3 + $0x38] sm:$0xf]
    %v243 = vld [vmem:[%s3 + $0x3c] sm:$0xf]
    %v245 = vperm.slane %v65, 0
    %v263 = vunpack.c.l.b16 %v228
    %v264 = vunpack.c.l.b16 %v229
    %v265 = vunpack.c.l.b16 %v230
    %v266 = vunpack.c.l.b16 %v231
    %v267 = vunpack.c.l.b16 %v232
    %v268 = vunpack.c.l.b16 %v233
    %v269 = vunpack.c.l.b16 %v234
    %v270 = vunpack.c.l.b16 %v235
    %v271 = vunpack.c.l.b16 %v236
    %v272 = vunpack.c.l.b16 %v237
    %v273 = vunpack.c.l.b16 %v238
    %v274 = vunpack.c.l.b16 %v239
    %v275 = vunpack.c.l.b16 %v240
    %v276 = vunpack.c.l.b16 %v241
    %v277 = vunpack.c.l.b16 %v242
    %v278 = vunpack.c.l.b16 %v243
    %v279 = vpack.c.b16 %v264, %v263
    %v280 = vpack.c.b16 %v266, %v265
    %v281 = vpack.c.b16 %v268, %v267
    %v282 = vpack.c.b16 %v270, %v269
    %v283 = vpack.c.b16 %v272, %v271
    %v284 = vpack.c.b16 %v274, %v273
    %v285 = vpack.c.b16 %v276, %v275
    %v286 = vpack.c.b16 %v278, %v277
    %295 = vmatpush.bf16.msra.mxu0 %v286
    %296 = vmatpush.bf16.msra.mxu0 %v285
    %297 = vmatpush.bf16.msra.mxu0 %v284
    %298 = vmatpush.bf16.msra.mxu0 %v283
    %299 = vmatpush.bf16.msra.mxu0 %v282
    %300 = vmatpush.bf16.msra.mxu0 %v281
    %301 = vmatpush.bf16.msra.mxu0 %v280
    %302 = vmatpush.bf16.msra.mxu0 %v279
    %303 = vmatmul.bf16.gmra.mxu0 %v224
    %v304 = vpop.f32.mrf.mxu0
    %v305 = vadd.f32 %v245, %v304
    %v306 = vpop.f32.mrf.mxu0
    %v307 = vadd.f32 %v245, %v306
    %308 = vmatmul.bf16.gmra.mxu0 %v225
    %v309 = vpop.f32.mrf.mxu0
    %v310 = vadd.f32 %v245, %v309
    %v311 = vpop.f32.mrf.mxu0
    %v312 = vadd.f32 %v245, %v311
    %313 = vmatmul.bf16.gmra.mxu0 %v226
    %v314 = vpop.f32.mrf.mxu0
    %v315 = vadd.f32 %v245, %v314
    %v316 = vpop.f32.mrf.mxu0
    %v317 = vadd.f32 %v245, %v316
    %318 = vmatmul.bf16.gmra.mxu0 %v227
    %v319 = vpop.f32.mrf.mxu0
    %v320 = vadd.f32 %v245, %v319
    %v321 = vpop.f32.mrf.mxu0
    %v322 = vadd.f32 %v245, %v321
    %323 = vdwg.mxu0
    %324 = vst [vmem:[%s5] sm:$0xff] %v305
    %325 = vst [vmem:[%s5 + $0x8] sm:$0xff] %v307
    %326 = vst [vmem:[%s5 + $0x10] sm:$0xff] %v310
    %327 = vst [vmem:[%s5 + $0x18] sm:$0xff] %v312
    %328 = vst [vmem:[%s5 + $0x20] sm:$0xff] %v315
    %329 = vst [vmem:[%s5 + $0x28] sm:$0xff] %v317
    %330 = vst [vmem:[%s5 + $0x30] sm:$0xff] %v320
    %331 = vst [vmem:[%s5 + $0x38] sm:$0xff] %v322
    // Predicated region
    $region30: #{dueling_q_forward.1} parent=1 // pred_check
      _
    $region31: #{dueling_q_forward.1} parent=1 // pred_check_branch
      %333 = sbr.rel (0) target = $region33
    $region32: #{dueling_q_forward.1} parent=1 // pred_region
      _
    $region33: #{dueling_q_forward.1} parent=1 // pred_fallthru
      _
    // Predicated region
    $region34: #{dueling_q_forward.1} parent=1 // pred_check
      _
    $region35: #{dueling_q_forward.1} parent=1 // pred_check_branch
      %335 = sbr.rel (0) target = $region37
    $region36: #{dueling_q_forward.1} parent=1 // pred_region
      _
    $region37: #{dueling_q_forward.1} parent=1 // pred_fallthru
      _
    %336 = vsyncpa [#allocation3], 1
    %337 = vsyncpa [#allocation5], 1

</llo_original>
